<compile_context>
chip_gen: v7x
topology: tpu7x:2x2x1
jax: 0.10.0
libtpu: 0.0.40
codegen_flags: <defaults>
</compile_context>

<pallas_src>
import math
import functools

import jax
import jax.numpy as jnp
from jax.experimental import pallas as pl
from jax.experimental.pallas import tpu as pltpu


def _build_positional_encoding(d_model: int, max_len: int) -> jnp.ndarray:
    """PE table matching torch's sin/cos interleave: [max_len, d_model]."""
    position = jnp.arange(max_len, dtype=jnp.float32)[:, None]
    div_term = jnp.exp(
        jnp.arange(0, d_model, 2, dtype=jnp.float32) * (-math.log(10000.0) / d_model)
    )
    pe = jnp.zeros((max_len, d_model), dtype=jnp.float32)
    pe = pe.at[:, 0::2].set(jnp.sin(position * div_term))
    pe = pe.at[:, 1::2].set(jnp.cos(position * div_term))
    return pe


def _vmem_capacity_bytes() -> int:
    try:
        return int(pltpu.get_tpu_info().vmem_capacity_bytes)
    except Exception:
        return 64 * 1024 * 1024  # conservative (v7x per-TC VMEM)


def _hash_u32(x):
    """lowbias32 finalizer: well-mixed uint32 per element (VALU-only)."""
    x = x ^ (x >> 16)
    x = x * jnp.uint32(0x7FEB352D)
    x = x ^ (x >> 15)
    x = x * jnp.uint32(0x846CA68B)
    x = x ^ (x >> 16)
    return x


def _make_kernel(p: float, training: bool, ts: int):
    """Build the kernel body. Seed arg only exists when dropout is active."""
    use_dropout = bool(training) and 0.0 < p < 1.0
    zero_all = bool(training) and p >= 1.0
    thresh = min(int(round(p * 4294967296.0)), 4294967295) if use_dropout else 0

    def compute(x, pe, seed_u32):
        if x.ndim == 3:
            y = x + pe[:, None, :]          # (ts, B, D) + (ts, 1, D): lane-dense if D%128==0
        else:
            y = x + pe                      # flat (ts, W) + (ts, W)
        if zero_all:
            return jnp.zeros_like(y)
        if use_dropout:
            shape = y.shape
            # Global element index -> counter-based PRNG (deterministic, per-tile
            # independent, decorrelated across seeds by the hash finalizer).
            row = jax.lax.broadcasted_iota(jnp.int32, shape, 0) + pl.program_id(0) * ts
            if y.ndim == 3:
                col = (jax.lax.broadcasted_iota(jnp.int32, shape, 1) * shape[2]
                       + jax.lax.broadcasted_iota(jnp.int32, shape, 2))
                width = shape[1] * shape[2]
            else:
                col = jax.lax.broadcasted_iota(jnp.int32, shape, 1)
                width = shape[1]
            idx = (row * width + col).astype(jnp.uint32)
            bits = _hash_u32(idx ^ (seed_u32 * jnp.uint32(0x9E3779B1)))
            keep = bits >= jnp.uint32(thresh)            # P(keep) = 1 - p
            scale = jnp.asarray(1.0 / (1.0 - p), dtype=y.dtype)
            y = jnp.where(keep, y * scale, jnp.zeros_like(y))
        return y

    if use_dropout:
        def kernel(seed_ref, x_ref, pe_ref, o_ref):
            o_ref[...] = compute(x_ref[...], pe_ref[...], seed_ref[0].astype(jnp.uint32))
    else:
        def kernel(x_ref, pe_ref, o_ref):
            o_ref[...] = compute(x_ref[...], pe_ref[...], None)
    return kernel


def _pick_block_rows(S: int, row_bytes: int, itemsize: int, block_rows) -> int:
    """dtype-aware, VMEM-sized, >=4-grid-step seq-tile size."""
    sub = max(8, (8 * 4) // max(itemsize, 1))        # 8 f32, 16 bf16, 32 int8
    if block_rows is not None:
        ts = min(int(block_rows), S)
        if ts < S:
            ts = max(sub, (ts // sub) * sub)
        return ts
    if S <= sub:
        return S
    vmem_cap = _vmem_capacity_bytes()
    target = max(1 << 20, min(vmem_cap // 8, 16 << 20))   # ~8 MiB on v7x, 16 MiB v5e/v6e
    rows = max(sub, target // max(row_bytes, 1))
    rows = min(rows, max(sub, -(-S // 4)))           # keep >= 4 grid steps (2 per v7x TC)
    rows = min(rows, S)
    return max(sub, (rows // sub) * sub)


def positional_encoder_forward(x, pe_table, *, p: float = 0.1,
                               training: bool = False, seed: int = 0,
                               block_rows: int | None = None):
    """x: [seq_len, batch, d_model].  Returns dropout(x + PE[:seq_len])."""
    S, B, D = x.shape
    if pe_table.shape[0] < S:
        raise ValueError("pe_table max_len is smaller than seq_len")

    # TODO(synk): PE is pre-cast to x.dtype, so for bf16 x the add runs in bf16;
    # torch (fp32 PE buffer) promotes the add to fp32.
    pe = pe_table[:S].astype(x.dtype)                # [S, D]
    itemsize = jnp.dtype(x.dtype).itemsize
    p = float(p)
    use_dropout = bool(training) and 0.0 < p < 1.0

    # Layout selection:
    #  * flat (S, B*D): B == 1, or D not lane-aligned but B*D is (narrow-D fix,
    #    keeps v5e's single store slot fed with full-width vsts).
    #  * 3-D (ts, B, D): everything else; lane-dense whenever D % 128 == 0,
    #    correctness fallback (masked stores) otherwise.
    flat = (B == 1) or (D % 128 != 0 and (B * D) % 128 == 0)

    row_bytes = B * D * itemsize
    ts = _pick_block_rows(S, row_bytes, itemsize, block_rows)
    grid = (pl.cdiv(S, ts),)

    kernel = _make_kernel(p, bool(training), ts)

    pe_cols = (B * D) if (flat and B > 1) else D
    block_bytes = ts * row_bytes
    pe_block_bytes = ts * pe_cols * itemsize
    # in + out double-buffered, PE double-buffered, ~4 block-sized temporaries.
    vmem_need = 2 * (2 * block_bytes + pe_block_bytes) + 4 * block_bytes + (2 << 20)
    vmem_cap = _vmem_capacity_bytes()
    vmem_limit = int(min(max(vmem_need, 32 << 20), vmem_cap * 3 // 4))

    compiler_params = pltpu.CompilerParams(
        dimension_semantics=("parallel",),           # shard seq tiles across v7x's 2 TCs
        vmem_limit_bytes=vmem_limit,
    )

    n_elem = S * B * D
    cost = pl.CostEstimate(
        flops=n_elem * (3 if use_dropout else 1),
        transcendentals=0,
        bytes_accessed=(2 * n_elem + S * pe_cols) * itemsize,
    )

    operands = []
    in_specs = []
    if use_dropout:
        operands.append(jnp.asarray([seed], dtype=jnp.int32))
        in_specs.append(pl.BlockSpec(memory_space=pltpu.MemorySpace.SMEM))

    if flat:
        W = B * D
        x2 = x.reshape(S, W)                         # contiguous merge, free
        # TODO(synk): pre-tiling PE reads up to S*B*D extra bytes; for very large B an
        # in-kernel tile would cut that, at the cost of per-block copy work.
        pe_in = pe if B == 1 else jnp.tile(pe, (1, B))
        operands += [x2, pe_in]
        in_specs += [pl.BlockSpec((ts, W), lambda i: (i, 0)),
                     pl.BlockSpec((ts, W), lambda i: (i, 0))]
        out2 = pl.pallas_call(
            kernel,
            out_shape=jax.ShapeDtypeStruct((S, W), x.dtype),
            grid=grid,
            in_specs=in_specs,
            out_specs=pl.BlockSpec((ts, W), lambda i: (i, 0)),
            compiler_params=compiler_params,
            cost_estimate=cost,
        )(*operands)
        return out2.reshape(S, B, D)

    operands += [x, pe]
    in_specs += [pl.BlockSpec((ts, B, D), lambda i: (i, 0, 0)),
                 pl.BlockSpec((ts, D), lambda i: (i, 0))]
    return pl.pallas_call(
        kernel,
        out_shape=jax.ShapeDtypeStruct((S, B, D), x.dtype),
        grid=grid,
        in_specs=in_specs,
        out_specs=pl.BlockSpec((ts, B, D), lambda i: (i, 0, 0)),
        compiler_params=compiler_params,
        cost_estimate=cost,
    )(*operands)


if __name__ == "__main__":
    key = jax.random.PRNGKey(0)
    k1, k2, k3 = jax.random.split(key, 3)
    dropout_p = 0.1
    max_len = 64  # small synthetic max_len (module default is 5000)

    # ---- Case 1: 3-D fallback path (D=32, B*D not lane-aligned) --------------
    S1, B1, D1 = 8, 2, 32
    x1 = jax.random.normal(k1, (S1, B1, D1), dtype=jnp.float32)
    pe1 = _build_positional_encoding(D1, max_len)
    out1 = jax.block_until_ready(
        positional_encoder_forward(x1, pe1, p=dropout_p, training=False))
    ref1 = x1 + pe1[:S1][:, None, :]
    assert out1.shape == (S1, B1, D1)
    assert jnp.allclose(out1, ref1, atol=1e-6, rtol=1e-6), "mismatch (3-D fallback)"

    # ---- Case 2: lane-dense 3-D path (D=128), multi-step grid ----------------
    S2, B2, D2 = 16, 2, 128
    x2 = jax.random.normal(k2, (S2, B2, D2), dtype=jnp.float32)
    pe2 = _build_positional_encoding(D2, max_len)
    out2 = jax.block_until_ready(
        positional_encoder_forward(x2, pe2, p=dropout_p, training=False))
    ref2 = x2 + pe2[:S2][:, None, :]
    assert out2.shape == (S2, B2, D2)
    assert jnp.allclose(out2, ref2, atol=1e-6, rtol=1e-6), "mismatch (3-D lane-dense)"

    # ---- Case 3: flat narrow-D path (D=32, B*D=128 lane-aligned) -------------
    S3, B3, D3 = 8, 4, 32
    x3 = jax.random.normal(k3, (S3, B3, D3), dtype=jnp.float32)
    pe3 = _build_positional_encoding(D3, max_len)
    out3 = jax.block_until_ready(
        positional_encoder_forward(x3, pe3, p=dropout_p, training=False))
    ref3 = x3 + pe3[:S3][:, None, :]
    assert out3.shape == (S3, B3, D3)
    assert jnp.allclose(out3, ref3, atol=1e-6, rtol=1e-6), "mismatch (flat narrow-D)"

    # ---- Case 4: training-mode inverted dropout (lane-dense path) ------------
    # Every element must be exactly 0 (dropped) or (x + pe) / (1 - p) (kept).
    out4 = jax.block_until_ready(
        positional_encoder_forward(x2, pe2, p=dropout_p, training=True, seed=1234))
    scaled = ref2 / (1.0 - dropout_p)
    ok = (out4 == 0.0) | (jnp.abs(out4 - scaled) <= 1e-5 * (1.0 + jnp.abs(scaled)))
    assert bool(jnp.all(ok)), "dropout output not in {0, (x+pe)/(1-p)}"
    n_zero = int(jnp.sum(out4 == 0.0))
    assert 0 < n_zero < out4.size // 2, "dropout rate looks wrong"

    print("KERNEL_OK")
</pallas_src>

<mosaic_0001>
module attributes {stable_mosaic.version = 11 : i64} {
  func.func @kernel(%arg0: i32, %arg1: memref<8x2x32xf32, #tpu.memory_space<vmem>>, %arg2: memref<8x32xf32, #tpu.memory_space<vmem>>, %arg3: memref<8x2x32xf32, #tpu.memory_space<vmem>>) attributes {dimension_semantics = [#tpu.dimension_semantics<parallel>], iteration_bounds = array<i64: 1>, scalar_prefetch = 0 : i64, scratch_operands = 0 : i64, tpu.core_type = #tpu.core_type<tc>, window_params = [{transform_indices = @transform_0, window_bounds = array<i64: 8, 2, 32>}, {transform_indices = @transform_1, window_bounds = array<i64: 8, 32>}, {transform_indices = @transform_2, window_bounds = array<i64: 8, 2, 32>}]} {
    %c0 = arith.constant 0 : index
    %c0_0 = arith.constant 0 : index
    %c0_1 = arith.constant 0 : index
    %0 = vector.load %arg1[%c0, %c0_0, %c0_1] : memref<8x2x32xf32, #tpu.memory_space<vmem>>, vector<8x2x32xf32>
    %c0_2 = arith.constant 0 : index
    %c0_3 = arith.constant 0 : index
    %1 = vector.load %arg2[%c0_2, %c0_3] : memref<8x32xf32, #tpu.memory_space<vmem>>, vector<8x32xf32>
    %2 = vector.shape_cast %1 : vector<8x32xf32> to vector<8x1x32xf32>
    %3 = vector.broadcast %2 : vector<8x1x32xf32> to vector<8x2x32xf32>
    %4 = arith.addf %0, %3 : vector<8x2x32xf32>
    %c0_4 = arith.constant 0 : index
    %c0_5 = arith.constant 0 : index
    %c0_6 = arith.constant 0 : index
    %5 = vector.load %arg3[%c0_4, %c0_5, %c0_6] : memref<8x2x32xf32, #tpu.memory_space<vmem>>, vector<8x2x32xf32>
    tpu.vector_store %arg3[%c0_4, %c0_5, %c0_6], %4 {strides = array<i32>} : memref<8x2x32xf32, #tpu.memory_space<vmem>>, vector<8x2x32xf32>,
    return
  }
  func.func @transform_0(%arg0: i32) -> (i32, i32, i32) {
    %c0_i32 = arith.constant 0 : i32
    %c0_i32_0 = arith.constant 0 : i32
    %c0_i32_1 = arith.constant 0 : i32
    return %arg0, %c0_i32, %c0_i32_0 : i32, i32, i32
  }
  func.func @transform_1(%arg0: i32) -> (i32, i32) {
    %c0_i32 = arith.constant 0 : i32
    %c0_i32_0 = arith.constant 0 : i32
    return %arg0, %c0_i32 : i32, i32
  }
  func.func @transform_2(%arg0: i32) -> (i32, i32, i32) {
    %c0_i32 = arith.constant 0 : i32
    %c0_i32_0 = arith.constant 0 : i32
    %c0_i32_1 = arith.constant 0 : i32
    return %arg0, %c0_i32, %c0_i32_0 : i32, i32, i32
  }
}

</mosaic_0001>

<llo_original>
// kernel: tpu_custom_call.1
$region0: #{tpu_custom_call.1}
  #allocation0 [shape = 'u32[]', space=smem, size = 0x4, offset = 0x4, fixed_abs, tag = 'smem constant byte address 0x4 - core index']
  #allocation1 [shape = 'u32[144,128]{1,0:T(1,128)}', space=vmem, size = 0x12000, scoped, tag = 'internal scratch']
  %s0 = inlined_call_operand.hbm [shape: f32[8,2,32], index: 0, kind: input, shape index: {}]
  %s1 = inlined_call_operand.hbm [shape: f32[8,32], index: 1, kind: input, shape index: {}]
  %s2 = inlined_call_operand.hbm [shape: f32[8,2,32], index: 2, kind: output, shape index: {}]
  %s3 = sld [smem:[#allocation0]]
  $region26: #{tpu_custom_call.1} parent=0
    _
  %s5 = ssub.s32 1, %s3
  %s6 = scalar_select 0, %s5, %s3
  $region1: #{tpu_custom_call.1} parent=0
    #allocation2 [shape = 'u8[8192]{0}', space=vmem, size = 0x2000, scoped, tag = 'input window, operand 0, single buffered']
    #allocation3 [shape = 's32[1]{0}', space=sflag, size = 0x4, scoped, tag = 'scoped memory for tpu_custom_call.1']
    #allocation4 [shape = 's32[1]{0}', space=sflag, size = 0x4, scoped, tag = 'scoped memory for tpu_custom_call.1']
    #allocation5 [shape = 'u8[4096]{0}', space=vmem, size = 0x1000, scoped, tag = 'input window, operand 1, single buffered']
    #allocation6 [shape = 's32[1]{0}', space=sflag, size = 0x4, scoped, tag = 'scoped memory for tpu_custom_call.1']
    #allocation7 [shape = 'u8[8192]{0}', space=vmem, size = 0x2000, scoped, tag = 'output window, operand 0, single buffered']
    %7 = vsyncpa [#allocation3], 0
    %8 = vsyncpa [#allocation6], 0
    %9 = vsyncpa [#allocation4], 0
    // Predicated region
    $region2: #{tpu_custom_call.1} parent=1 // pred_check
      _
    $region3: #{tpu_custom_call.1} parent=1 // pred_check_branch
      %11 = sbr.rel (0) target = $region5
    $region4: #{tpu_custom_call.1} parent=1 // pred_region
      %s13 = ssub.s32 256, 256
      %14 = vsyncadd [#allocation3], %s13
      %s15 = sshll.u32 [#allocation2], 4
      %s16 = int_to_ptr.vmem [resolvable:$true] %s15
      %21 = dma.hbm_to_vmem [thread:$0]  %s0, 256, %s16, [#allocation3], 32, 32, 2
    $region5: #{tpu_custom_call.1} parent=1 // pred_fallthru
      _
    // Predicated region
    $region6: #{tpu_custom_call.1} parent=1 // pred_check
      _
    $region7: #{tpu_custom_call.1} parent=1 // pred_check_branch
      %23 = sbr.rel (0) target = $region9
    $region8: #{tpu_custom_call.1} parent=1 // pred_region
      %s25 = ssub.s32 128, 128
      %26 = vsyncadd [#allocation6], %s25
      %s28 = sshll.u32 [#allocation5], 4
      %s29 = int_to_ptr.vmem [resolvable:$true] %s28
      %31 = dma.hbm_to_vmem [thread:$0]  %s1, 128, %s29, [#allocation6]
    $region9: #{tpu_custom_call.1} parent=1 // pred_fallthru
      _
    // Predicated region
    $region10: #{tpu_custom_call.1} parent=1 // pred_check
      _
    $region11: #{tpu_custom_call.1} parent=1 // pred_check_branch
      %33 = sbr.rel (0) target = $region13
    $region12: #{tpu_custom_call.1} parent=1 // pred_region
      %34 = dma.done [#allocation3], 256
    $region13: #{tpu_custom_call.1} parent=1 // pred_fallthru
      _
    // Predicated region
    $region14: #{tpu_custom_call.1} parent=1 // pred_check
      _
    $region15: #{tpu_custom_call.1} parent=1 // pred_check_branch
      %36 = sbr.rel (0) target = $region17
    $region16: #{tpu_custom_call.1} parent=1 // pred_region
      %37 = dma.done [#allocation6], 128
    $region17: #{tpu_custom_call.1} parent=1 // pred_fallthru
      _
    %v38 = vld [vmem:[#allocation2] sm:$0x3]
    %v39 = vld [vmem:[#allocation2 + $0x2] sm:$0x3]
    %v40 = vld [vmem:[#allocation2 + $0x4] sm:$0x3]
    %v41 = vld [vmem:[#allocation2 + $0x6] sm:$0x3]
    %v42 = vld [vmem:[#allocation2 + $0x8] sm:$0x3]
    %v43 = vld [vmem:[#allocation2 + $0xa] sm:$0x3]
    %v44 = vld [vmem:[#allocation2 + $0xc] sm:$0x3]
    %v45 = vld [vmem:[#allocation2 + $0xe] sm:$0x3]
    %v46 = vld [vmem:[#allocation5] sm:$0xff]
    %v48 = vcombine.high %v46, %v46
    %v50 = vunpack.c.l.s4 1966171168
    %v51 = vunpack.c.0.s8 %v50
    %v52 = vlaneseq
    %v53 = vshrl.u32 %v52, 7
    %v54 = vsub.s32 %v51, %v53
    %v55 = vrot.slane %v46, %v54
    %v57 = vunpack.c.l.s4 1966171168
    %v58 = vunpack.c.0.s8 %v57
    %v59 = vlaneseq
    %v60 = vshrl.u32 %v59, 7
    %v61 = vsub.s32 %v58, %v60
    %v62 = vrot.slane %v48, %v61
    %v63 = vcombine.high %v55, %v55
    %v64 = vcombine.high %v62, %v62
    %v66 = vunpack.c.l.s4 1966171168
    %v67 = vunpack.c.0.s8 %v66
    %v68 = vlaneseq
    %v69 = vshrl.u32 %v68, 7
    %v70 = vsub.s32 %v67, %v69
    %v71 = vrot.slane %v55, %v70
    %v73 = vunpack.c.l.s4 1966171168
    %v74 = vunpack.c.0.s8 %v73
    %v75 = vlaneseq
    %v76 = vshrl.u32 %v75, 7
    %v77 = vsub.s32 %v74, %v76
    %v78 = vrot.slane %v62, %v77
    %v80 = vunpack.c.l.s4 1966171168
    %v81 = vunpack.c.0.s8 %v80
    %v82 = vlaneseq
    %v83 = vshrl.u32 %v82, 7
    %v84 = vsub.s32 %v81, %v83
    %v85 = vrot.slane %v63, %v84
    %v87 = vunpack.c.l.s4 1966171168
    %v88 = vunpack.c.0.s8 %v87
    %v89 = vlaneseq
    %v90 = vshrl.u32 %v89, 7
    %v91 = vsub.s32 %v88, %v90
    %v92 = vrot.slane %v64, %v91
    %v93 = vcombine.high %v71, %v71
    %v94 = vcombine.high %v78, %v78
    %v95 = vcombine.high %v85, %v85
    %v96 = vcombine.high %v92, %v92
    %v97 = vlaneseq
    %v98 = vshrl.u32 %v97, 7
    %v99 = vsub.s32 0, %v98
    %v100 = vrot.slane %v71, %v99
    %v101 = vlaneseq
    %v102 = vshrl.u32 %v101, 7
    %v103 = vsub.s32 0, %v102
    %v104 = vrot.slane %v85, %v103
    %v105 = vlaneseq
    %v106 = vshrl.u32 %v105, 7
    %v107 = vsub.s32 0, %v106
    %v108 = vrot.slane %v93, %v107
    %v109 = vlaneseq
    %v110 = vshrl.u32 %v109, 7
    %v111 = vsub.s32 0, %v110
    %v112 = vrot.slane %v95, %v111
    %v113 = vlaneseq
    %v114 = vshrl.u32 %v113, 7
    %v115 = vsub.s32 0, %v114
    %v116 = vrot.slane %v78, %v115
    %v117 = vlaneseq
    %v118 = vshrl.u32 %v117, 7
    %v119 = vsub.s32 0, %v118
    %v120 = vrot.slane %v92, %v119
    %v121 = vlaneseq
    %v122 = vshrl.u32 %v121, 7
    %v123 = vsub.s32 0, %v122
    %v124 = vrot.slane %v94, %v123
    %v125 = vlaneseq
    %v126 = vshrl.u32 %v125, 7
    %v127 = vsub.s32 0, %v126
    %v128 = vrot.slane %v96, %v127
    %v137 = vadd.f32 %v38, %v100
    %v138 = vadd.f32 %v39, %v104
    %v139 = vadd.f32 %v40, %v108
    %v140 = vadd.f32 %v41, %v112
    %v141 = vadd.f32 %v42, %v116
    %v142 = vadd.f32 %v43, %v120
    %v143 = vadd.f32 %v44, %v124
    %v144 = vadd.f32 %v45, %v128
    %vm145 = vcmask 254976
    %146 = vst.msk [vmem:[#allocation7] sm:$0x3] %vm145, %v137
    %147 = vst.msk [vmem:[#allocation7 + $0x2] sm:$0x3] %vm145, %v138
    %148 = vst.msk [vmem:[#allocation7 + $0x4] sm:$0x3] %vm145, %v139
    %149 = vst.msk [vmem:[#allocation7 + $0x6] sm:$0x3] %vm145, %v140
    %150 = vst.msk [vmem:[#allocation7 + $0x8] sm:$0x3] %vm145, %v141
    %151 = vst.msk [vmem:[#allocation7 + $0xa] sm:$0x3] %vm145, %v142
    %152 = vst.msk [vmem:[#allocation7 + $0xc] sm:$0x3] %vm145, %v143
    %153 = vst.msk [vmem:[#allocation7 + $0xe] sm:$0x3] %vm145, %v144
    // Predicated region
    $region18: #{tpu_custom_call.1} parent=1 // pred_check
      _
    $region19: #{tpu_custom_call.1} parent=1 // pred_check_branch
      %155 = sbr.rel (0) target = $region21
    $region20: #{tpu_custom_call.1} parent=1 // pred_region
      %s157 = ssub.s32 256, 256
      %158 = vsyncadd [#allocation4], %s157
      %s159 = sshll.u32 [#allocation7], 4
      %s160 = int_to_ptr.vmem [resolvable:$true] %s159
      %165 = dma.vmem_to_hbm [thread:$0]  %s160, 256, %s2, [#allocation4], 32, 32, 2
    $region21: #{tpu_custom_call.1} parent=1 // pred_fallthru
      _
    // Predicated region
    $region22: #{tpu_custom_call.1} parent=1 // pred_check
      _
    $region23: #{tpu_custom_call.1} parent=1 // pred_check_branch
      %167 = sbr.rel (0) target = $region25
    $region24: #{tpu_custom_call.1} parent=1 // pred_region
      %168 = dma.done [#allocation4], 256
    $region25: #{tpu_custom_call.1} parent=1 // pred_fallthru
      _
    %169 = vsyncpa [#allocation3], 1
    %170 = vsyncpa [#allocation6], 1
    %171 = vsyncpa [#allocation4], 1

</llo_original>
